<compile_context>
chip_gen: v5e
topology: v5e:2x2
jax: 0.10.0
libtpu: 0.0.40
codegen_flags: <defaults>
</compile_context>

<pallas_src>
import math

import jax
import jax.numpy as jnp
from jax.experimental import pallas as pl
from jax.experimental.pallas import tpu as pltpu


# --------------------------------------------------------------------------
# Kernel: the whole 2-layer GCN forward as four wide 2-D matmuls.
# --------------------------------------------------------------------------
def gcn_kernel(x_ref, adj_ref, w1_ref, b1_ref, w2_ref, b2_ref, out_ref):
    # x_ref  : (N, S*Cin)    S = B*L slabs packed along lanes
    # adj_ref: (N, N)
    # w1_ref : (S*Cin, S*H)  = kron(I_S, W1)   (block-diagonal)
    # b1_ref : (1, S*H)      = tile(b1, S)
    # w2_ref : (S*H, S*Cout) = kron(I_S, W2)
    # b2_ref : (1, S*Cout)   = tile(b2, S)
    # out_ref: (N, S*Cout)
    x = x_ref[...]
    adj = adj_ref[...]

    # --- GraphConvolution 1 + ReLU (channel mix, node mix, bias) ---
    s1 = jnp.dot(x, w1_ref[...], preferred_element_type=jnp.float32)
    h1 = jnp.dot(adj, s1, preferred_element_type=jnp.float32) + b1_ref[...]
    h1 = jnp.maximum(h1, 0.0)

    # --- GraphConvolution 2 ---
    s2 = jnp.dot(h1, w2_ref[...], preferred_element_type=jnp.float32)
    h2 = jnp.dot(adj, s2, preferred_element_type=jnp.float32) + b2_ref[...]

    out_ref[...] = h2.astype(out_ref.dtype)


# --------------------------------------------------------------------------
# One-time parameter preparation (hoisted out of the per-call path).
# --------------------------------------------------------------------------
def make_gcn_params(w1, b1, w2, b2, num_slabs):
    """Build block-diagonal weights / tiled biases once, at init time."""
    eye = jnp.eye(num_slabs, dtype=w1.dtype)
    w1_big = jnp.kron(eye, w1)                                 # (S*Cin, S*H)
    w2_big = jnp.kron(eye, w2)                                 # (S*H, S*Cout)
    b1_t = jnp.tile(b1.reshape(-1), num_slabs).reshape(1, -1)  # (1, S*H)
    b2_t = jnp.tile(b2.reshape(-1), num_slabs).reshape(1, -1)  # (1, S*Cout)
    return w1_big, b1_t, w2_big, b2_t


# --------------------------------------------------------------------------
# Packed entry point: no layout glue, single pallas_call, single grid step.
# --------------------------------------------------------------------------
def gcn_forward_packed(xg, adj, w1_big, b1_t, w2_big, b2_t):
    """xg: (N, S*Cin) lane-packed input.  Returns (N, S*Cout)."""
    N = adj.shape[0]
    lanes_out = w2_big.shape[1]
    return pl.pallas_call(
        gcn_kernel,
        out_shape=jax.ShapeDtypeStruct((N, lanes_out), jnp.float32),
        in_specs=[
            pl.BlockSpec(xg.shape, lambda: (0, 0)),
            pl.BlockSpec(adj.shape, lambda: (0, 0)),
            pl.BlockSpec(w1_big.shape, lambda: (0, 0)),
            pl.BlockSpec(b1_t.shape, lambda: (0, 0)),
            pl.BlockSpec(w2_big.shape, lambda: (0, 0)),
            pl.BlockSpec(b2_t.shape, lambda: (0, 0)),
        ],
        out_specs=pl.BlockSpec((N, lanes_out), lambda: (0, 0)),
    )(xg, adj, w1_big, b1_t, w2_big, b2_t)


# --------------------------------------------------------------------------
# NCHW-compatible wrapper (matches the PyTorch module's (B, C, N, L) layout).
# Jitted so the layout transposes fuse into the same XLA program.
# --------------------------------------------------------------------------
def _gcn_forward_nchw(x, adj, w1_big, b1_t, w2_big, b2_t):
    B, Cin, N, L = x.shape
    S = B * L
    Cout = w2_big.shape[1] // S

    # (B, Cin, N, L) -> (N, B, L, Cin) -> (N, S*Cin), lane = (b*L + l)*Cin + c
    xg = jnp.transpose(x, (2, 0, 3, 1)).reshape(N, S * Cin)

    out = gcn_forward_packed(xg, adj, w1_big, b1_t, w2_big, b2_t)

    # (N, S*Cout) -> (N, B, L, Cout) -> (B, Cout, N, L)
    out = out.reshape(N, B, L, Cout)
    return jnp.transpose(out, (1, 3, 0, 2))


gcn_forward = jax.jit(_gcn_forward_nchw)


# --------------------------------------------------------------------------
# Plain-JAX reference identical to the PyTorch forward.
# --------------------------------------------------------------------------
def gcn_reference(x, adj, w1, b1, w2, b2):
    s = jnp.einsum('ijkl,jm->imkl', x, w1)
    o = jnp.einsum('ak,ijkl->ijal', adj, s) + b1.reshape(1, -1, 1, 1)
    h = jax.nn.relu(o)
    s2 = jnp.einsum('ijkl,jm->imkl', h, w2)
    o2 = jnp.einsum('ak,ijkl->ijal', adj, s2) + b2.reshape(1, -1, 1, 1)
    return o2


if __name__ == "__main__":
    # Small shapes consistent with the module's forward.
    B, Cin, N, L = 2, 4, 16, 8        # batch, input_size, num_nodes, seq
    H, Cout = 32, 8                   # hidden_size, output_size
    S = B * L                         # 16 slabs -> output lanes = S*Cout = 128

    key = jax.random.PRNGKey(0)
    kx, ka, k1, k2, k3, k4 = jax.random.split(key, 6)

    x = jax.random.normal(kx, (B, Cin, N, L), dtype=jnp.float32)
    adj = jax.random.uniform(ka, (N, N), dtype=jnp.float32)

    # Deterministic init mimicking GraphConvolution.reset_parameters
    stdv1 = 1.0 / math.sqrt(Cin)
    w1 = jax.random.uniform(k1, (Cin, H), jnp.float32, -stdv1, stdv1)
    b1 = jax.random.uniform(k2, (H,), jnp.float32, -stdv1, stdv1)
    stdv2 = 1.0 / math.sqrt(H)
    w2 = jax.random.uniform(k3, (H, Cout), jnp.float32, -stdv2, stdv2)
    b2 = jax.random.uniform(k4, (Cout,), jnp.float32, -stdv2, stdv2)

    # One-time (init-time) parameter preparation.
    w1_big, b1_t, w2_big, b2_t = make_gcn_params(w1, b1, w2, b2, S)
    w1_big, b1_t, w2_big, b2_t = jax.block_until_ready(
        (w1_big, b1_t, w2_big, b2_t))

    out = gcn_forward(x, adj, w1_big, b1_t, w2_big, b2_t)
    out = jax.block_until_ready(out)

    ref = gcn_reference(x, adj, w1, b1, w2, b2)
    assert out.shape == (B, Cout, N, L), out.shape
    assert jnp.allclose(out, ref, rtol=1e-4, atol=1e-4), \
        float(jnp.max(jnp.abs(out - ref)))

    print("KERNEL_OK")
</pallas_src>

<mosaic_0001>
module attributes {stable_mosaic.version = 11 : i64} {
  func.func @gcn_kernel(%arg0: memref<16x64xf32, #tpu.memory_space<vmem>>, %arg1: memref<16x16xf32, #tpu.memory_space<vmem>>, %arg2: memref<64x512xf32, #tpu.memory_space<vmem>>, %arg3: memref<1x512xf32, #tpu.memory_space<vmem>>, %arg4: memref<512x128xf32, #tpu.memory_space<vmem>>, %arg5: memref<1x128xf32, #tpu.memory_space<vmem>>, %arg6: memref<16x128xf32, #tpu.memory_space<vmem>>) attributes {dimension_semantics = [], scalar_prefetch = 0 : i64, scratch_operands = 0 : i64, tpu.core_type = #tpu.core_type<tc>} {
    %c0 = arith.constant 0 : index
    %c0_0 = arith.constant 0 : index
    %0 = vector.load %arg0[%c0, %c0_0] : memref<16x64xf32, #tpu.memory_space<vmem>>, vector<16x64xf32>
    %c0_1 = arith.constant 0 : index
    %c0_2 = arith.constant 0 : index
    %1 = vector.load %arg1[%c0_1, %c0_2] : memref<16x16xf32, #tpu.memory_space<vmem>>, vector<16x16xf32>
    %c0_3 = arith.constant 0 : index
    %c0_4 = arith.constant 0 : index
    %2 = vector.load %arg2[%c0_3, %c0_4] : memref<64x512xf32, #tpu.memory_space<vmem>>, vector<64x512xf32>
    %cst = arith.constant dense<0.000000e+00> : vector<16x512xf32>
    %3 = tpu.matmul %0, %2, %cst {dimension_numbers = #tpu.dot_dimension_numbers<[1], [0], [0], [1], [0, 0, 1, 1], [], []>} : vector<16x64xf32>, vector<64x512xf32>, vector<16x512xf32> -> vector<16x512xf32>
    %cst_5 = arith.constant dense<0.000000e+00> : vector<16x512xf32>
    %4 = tpu.matmul %1, %3, %cst_5 {dimension_numbers = #tpu.dot_dimension_numbers<[1], [0], [0], [1], [0, 0, 1, 1], [], []>} : vector<16x16xf32>, vector<16x512xf32>, vector<16x512xf32> -> vector<16x512xf32>
    %c0_6 = arith.constant 0 : index
    %c0_7 = arith.constant 0 : index
    %5 = vector.load %arg3[%c0_6, %c0_7] : memref<1x512xf32, #tpu.memory_space<vmem>>, vector<1x512xf32>
    %6 = vector.broadcast %5 : vector<1x512xf32> to vector<16x512xf32>
    %7 = arith.addf %4, %6 : vector<16x512xf32>
    %cst_8 = arith.constant 0.000000e+00 : f32
    %8 = vector.broadcast %cst_8 : f32 to vector<16x512xf32>
    %9 = arith.maximumf %7, %8 : vector<16x512xf32>
    %c0_9 = arith.constant 0 : index
    %c0_10 = arith.constant 0 : index
    %10 = vector.load %arg4[%c0_9, %c0_10] : memref<512x128xf32, #tpu.memory_space<vmem>>, vector<512x128xf32>
    %cst_11 = arith.constant dense<0.000000e+00> : vector<16x128xf32>
    %11 = tpu.matmul %9, %10, %cst_11 {dimension_numbers = #tpu.dot_dimension_numbers<[1], [0], [0], [1], [0, 0, 1, 1], [], []>} : vector<16x512xf32>, vector<512x128xf32>, vector<16x128xf32> -> vector<16x128xf32>
    %cst_12 = arith.constant dense<0.000000e+00> : vector<16x128xf32>
    %12 = tpu.matmul %1, %11, %cst_12 {dimension_numbers = #tpu.dot_dimension_numbers<[1], [0], [0], [1], [0, 0, 1, 1], [], []>} : vector<16x16xf32>, vector<16x128xf32>, vector<16x128xf32> -> vector<16x128xf32>
    %c0_13 = arith.constant 0 : index
    %c0_14 = arith.constant 0 : index
    %13 = vector.load %arg5[%c0_13, %c0_14] : memref<1x128xf32, #tpu.memory_space<vmem>>, vector<1x128xf32>
    %14 = vector.broadcast %13 : vector<1x128xf32> to vector<16x128xf32>
    %15 = arith.addf %12, %14 : vector<16x128xf32>
    %c0_15 = arith.constant 0 : index
    %c0_16 = arith.constant 0 : index
    %16 = vector.load %arg6[%c0_15, %c0_16] : memref<16x128xf32, #tpu.memory_space<vmem>>, vector<16x128xf32>
    tpu.vector_store %arg6[%c0_15, %c0_16], %15 {strides = array<i32>} : memref<16x128xf32, #tpu.memory_space<vmem>>, vector<16x128xf32>,
    return
  }
}

</mosaic_0001>

<llo_original>
// kernel: _gcn_forward_nchw.1
$region0: #{_gcn_forward_nchw.1}
  #allocation0 [shape = 'u32[]', space=smem, size = 0x4, offset = 0x4, fixed_abs, tag = 'smem constant byte address 0x4 - core index']
  #allocation1 [shape = 'u32[72,128]{1,0:T(1,128)}', space=vmem, size = 0x9000, scoped, tag = 'internal scratch']
  %s0 = inlined_call_operand.vmem [shape: f32[16,64], index: 0, kind: input, shape index: {}]
  %s1 = inlined_call_operand.vmem [shape: f32[16,16], index: 1, kind: input, shape index: {}]
  %s2 = inlined_call_operand.hbm [shape: f32[64,512], index: 2, kind: input, shape index: {}]
  %s3 = inlined_call_operand.vmem [shape: f32[1,512], index: 3, kind: input, shape index: {}]
  %s4 = inlined_call_operand.hbm [shape: f32[512,128], index: 4, kind: input, shape index: {}]
  %s5 = inlined_call_operand.vmem [shape: f32[1,128], index: 5, kind: input, shape index: {}]
  %s6 = inlined_call_operand.vmem [shape: f32[16,128], index: 6, kind: output, shape index: {}]
  %s7 = sld [smem:[#allocation0]]
  $region42: #{_gcn_forward_nchw.1} parent=0
    _
  %s9 = ssub.s32 1, %s7
  %s10 = scalar_select 0, %s9, %s7
  $region1: #{_gcn_forward_nchw.1} parent=0
    #allocation2 [shape = 'u8[131072]{0}', space=vmem, size = 0x20000, scoped, tag = 'input window, operand 2, single buffered']
    #allocation3 [shape = 's32[1]{0}', space=sflag, size = 0x4, scoped, tag = 'scoped memory for _gcn_forward_nchw.1']
    #allocation4 [shape = 'u8[262144]{0}', space=vmem, size = 0x40000, scoped, tag = 'input window, operand 4, single buffered']
    #allocation5 [shape = 's32[1]{0}', space=sflag, size = 0x4, scoped, tag = 'scoped memory for _gcn_forward_nchw.1']
    %11 = vsyncpa [#allocation3], 0
    %12 = vsyncpa [#allocation5], 0
    // Predicated region
    $region2: #{_gcn_forward_nchw.1} parent=1 // pred_check
      _
    $region3: #{_gcn_forward_nchw.1} parent=1 // pred_check_branch
      %14 = sbr.rel (0) target = $region5
    $region4: #{_gcn_forward_nchw.1} parent=1 // pred_region
      _
    $region5: #{_gcn_forward_nchw.1} parent=1 // pred_fallthru
      _
    // Predicated region
    $region6: #{_gcn_forward_nchw.1} parent=1 // pred_check
      _
    $region7: #{_gcn_forward_nchw.1} parent=1 // pred_check_branch
      %16 = sbr.rel (0) target = $region9
    $region8: #{_gcn_forward_nchw.1} parent=1 // pred_region
      _
    $region9: #{_gcn_forward_nchw.1} parent=1 // pred_fallthru
      _
    // Predicated region
    $region10: #{_gcn_forward_nchw.1} parent=1 // pred_check
      _
    $region11: #{_gcn_forward_nchw.1} parent=1 // pred_check_branch
      %18 = sbr.rel (0) target = $region13
    $region12: #{_gcn_forward_nchw.1} parent=1 // pred_region
      %20 = vsyncadd [#allocation3], 0
      %s21 = sshll.u32 %s2, 4
      %s22 = int_to_ptr.hbm [resolvable:$true] %s21
      %s23 = sshll.u32 [#allocation2], 4
      %s24 = int_to_ptr.vmem [resolvable:$true] %s23
      %29 = dma.hbm_to_vmem [thread:$0]  %s22, 4096, %s24, [#allocation3], 512, 512, 32
    $region13: #{_gcn_forward_nchw.1} parent=1 // pred_fallthru
      _
    // Predicated region
    $region14: #{_gcn_forward_nchw.1} parent=1 // pred_check
      _
    $region15: #{_gcn_forward_nchw.1} parent=1 // pred_check_branch
      %31 = sbr.rel (0) target = $region17
    $region16: #{_gcn_forward_nchw.1} parent=1 // pred_region
      _
    $region17: #{_gcn_forward_nchw.1} parent=1 // pred_fallthru
      _
    // Predicated region
    $region18: #{_gcn_forward_nchw.1} parent=1 // pred_check
      _
    $region19: #{_gcn_forward_nchw.1} parent=1 // pred_check_branch
      %33 = sbr.rel (0) target = $region21
    $region20: #{_gcn_forward_nchw.1} parent=1 // pred_region
      %35 = vsyncadd [#allocation5], 0
      %s36 = sshll.u32 %s4, 4
      %s37 = int_to_ptr.hbm [resolvable:$true] %s36
      %s38 = sshll.u32 [#allocation4], 4
      %s39 = int_to_ptr.vmem [resolvable:$true] %s38
      %44 = dma.hbm_to_vmem [thread:$0]  %s37, 8192, %s39, [#allocation5], 128, 128, 8
    $region21: #{_gcn_forward_nchw.1} parent=1 // pred_fallthru
      _
    // Predicated region
    $region22: #{_gcn_forward_nchw.1} parent=1 // pred_check
      _
    $region23: #{_gcn_forward_nchw.1} parent=1 // pred_check_branch
      %46 = sbr.rel (0) target = $region25
    $region24: #{_gcn_forward_nchw.1} parent=1 // pred_region
      _
    $region25: #{_gcn_forward_nchw.1} parent=1 // pred_fallthru
      _
    // Predicated region
    $region26: #{_gcn_forward_nchw.1} parent=1 // pred_check
      _
    $region27: #{_gcn_forward_nchw.1} parent=1 // pred_check_branch
      %48 = sbr.rel (0) target = $region29
    $region28: #{_gcn_forward_nchw.1} parent=1 // pred_region
      %50 = dma.done [#allocation3], 4096
    $region29: #{_gcn_forward_nchw.1} parent=1 // pred_fallthru
      _
    // Predicated region
    $region30: #{_gcn_forward_nchw.1} parent=1 // pred_check
      _
    $region31: #{_gcn_forward_nchw.1} parent=1 // pred_check_branch
      %52 = sbr.rel (0) target = $region33
    $region32: #{_gcn_forward_nchw.1} parent=1 // pred_region
      %54 = dma.done [#allocation5], 8192
    $region33: #{_gcn_forward_nchw.1} parent=1 // pred_fallthru
      _
    %v55 = vld [vmem:[%s0] sm:$0xff]
    %v56 = vld [vmem:[%s0 + $0x8] sm:$0xff]
    %v57 = vld [vmem:[%s1] sm:$0xff]
    %v58 = vld [vmem:[%s1 + $0x8] sm:$0xff]
    %v59 = vld [vmem:[#allocation2] sm:$0xff]
    %v60 = vld [vmem:[#allocation2 + $0x8] sm:$0xff]
    %v61 = vld [vmem:[#allocation2 + $0x10] sm:$0xff]
    %v62 = vld [vmem:[#allocation2 + $0x18] sm:$0xff]
    %v63 = vld [vmem:[#allocation2 + $0x20] sm:$0xff]
    %v64 = vld [vmem:[#allocation2 + $0x28] sm:$0xff]
    %v65 = vld [vmem:[#allocation2 + $0x30] sm:$0xff]
    %v66 = vld [vmem:[#allocation2 + $0x38] sm:$0xff]
    %v67 = vld [vmem:[#allocation2 + $0x40] sm:$0xff]
    %v68 = vld [vmem:[#allocation2 + $0x48] sm:$0xff]
    %v69 = vld [vmem:[#allocation2 + $0x50] sm:$0xff]
    %v70 = vld [vmem:[#allocation2 + $0x58] sm:$0xff]
    %v71 = vld [vmem:[#allocation2 + $0x60] sm:$0xff]
    %v72 = vld [vmem:[#allocation2 + $0x68] sm:$0xff]
    %v73 = vld [vmem:[#allocation2 + $0x70] sm:$0xff]
    %v74 = vld [vmem:[#allocation2 + $0x78] sm:$0xff]
    %v75 = vld [vmem:[#allocation2 + $0x80] sm:$0xff]
    %v76 = vld [vmem:[#allocation2 + $0x88] sm:$0xff]
    %v77 = vld [vmem:[#allocation2 + $0x90] sm:$0xff]
    %v78 = vld [vmem:[#allocation2 + $0x98] sm:$0xff]
    %v79 = vld [vmem:[#allocation2 + $0xa0] sm:$0xff]
    %v80 = vld [vmem:[#allocation2 + $0xa8] sm:$0xff]
    %v81 = vld [vmem:[#allocation2 + $0xb0] sm:$0xff]
    %v82 = vld [vmem:[#allocation2 + $0xb8] sm:$0xff]
    %v83 = vld [vmem:[#allocation2 + $0xc0] sm:$0xff]
    %v84 = vld [vmem:[#allocation2 + $0xc8] sm:$0xff]
    %v85 = vld [vmem:[#allocation2 + $0xd0] sm:$0xff]
    %v86 = vld [vmem:[#allocation2 + $0xd8] sm:$0xff]
    %v87 = vld [vmem:[#allocation2 + $0xe0] sm:$0xff]
    %v88 = vld [vmem:[#allocation2 + $0xe8] sm:$0xff]
    %v89 = vld [vmem:[#allocation2 + $0xf0] sm:$0xff]
    %v90 = vld [vmem:[#allocation2 + $0xf8] sm:$0xff]
    %vm91 = vcmask 523264
    %v93 = vsel %vm91, %v55, 0
    %v96 = vsel %vm91, %v56, 0
    %98 = vmatpush.msra.mxu0 0.0
    %99 = vmatpush.msra.mxu0 0.0
    %100 = vmatpush.msra.mxu0 0.0
    %101 = vmatpush.msra.mxu0 0.0
    %102 = vmatpush.msra.mxu0 0.0
    %103 = vmatpush.msra.mxu0 0.0
    %104 = vmatpush.msra.mxu0 0.0
    %105 = vmatpush.msra.mxu0 0.0
    %106 = vmatpush.msra.mxu0 %v87
    %107 = vmatpush.msra.mxu0 %v83
    %108 = vmatpush.msra.mxu0 %v79
    %109 = vmatpush.msra.mxu0 %v75
    %110 = vmatpush.msra.mxu0 %v71
    %111 = vmatpush.msra.mxu0 %v67
    %112 = vmatpush.msra.mxu0 %v63
    %113 = vmatpush.msra.mxu0 %v59
    %114 = vmatmul.f32.gmra.mxu0 %v93
    %v115 = vpop.f32.mrf.mxu0
    %v116 = vadd.f32 0.0, %v115
    %117 = vmatmul.f32.gmra.mxu0 %v96
    %v118 = vpop.f32.mrf.mxu0
    %v119 = vadd.f32 0.0, %v118
    %120 = vdwg.mxu0
    %121 = vmatpush.msra.mxu0 0.0
    %122 = vmatpush.msra.mxu0 0.0
    %123 = vmatpush.msra.mxu0 0.0
    %124 = vmatpush.msra.mxu0 0.0
    %125 = vmatpush.msra.mxu0 0.0
    %126 = vmatpush.msra.mxu0 0.0
    %127 = vmatpush.msra.mxu0 0.0
    %128 = vmatpush.msra.mxu0 0.0
    %129 = vmatpush.msra.mxu0 %v88
    %130 = vmatpush.msra.mxu0 %v84
    %131 = vmatpush.msra.mxu0 %v80
    %132 = vmatpush.msra.mxu0 %v76
    %133 = vmatpush.msra.mxu0 %v72
    %134 = vmatpush.msra.mxu0 %v68
    %135 = vmatpush.msra.mxu0 %v64
    %136 = vmatpush.msra.mxu0 %v60
    %137 = vmatmul.f32.gmra.mxu0 %v93
    %v138 = vpop.f32.mrf.mxu0
    %v139 = vadd.f32 0.0, %v138
    %140 = vmatmul.f32.gmra.mxu0 %v96
    %v141 = vpop.f32.mrf.mxu0
    %v142 = vadd.f32 0.0, %v141
    %143 = vdwg.mxu0
    %144 = vmatpush.msra.mxu0 0.0
    %145 = vmatpush.msra.mxu0 0.0
    %146 = vmatpush.msra.mxu0 0.0
    %147 = vmatpush.msra.mxu0 0.0
    %148 = vmatpush.msra.mxu0 0.0
    %149 = vmatpush.msra.mxu0 0.0
    %150 = vmatpush.msra.mxu0 0.0
    %151 = vmatpush.msra.mxu0 0.0
    %152 = vmatpush.msra.mxu0 %v89
    %153 = vmatpush.msra.mxu0 %v85
    %154 = vmatpush.msra.mxu0 %v81
    %155 = vmatpush.msra.mxu0 %v77
    %156 = vmatpush.msra.mxu0 %v73
    %157 = vmatpush.msra.mxu0 %v69
    %158 = vmatpush.msra.mxu0 %v65
    %159 = vmatpush.msra.mxu0 %v61
    %160 = vmatmul.f32.gmra.mxu0 %v93
    %v161 = vpop.f32.mrf.mxu0
    %v162 = vadd.f32 0.0, %v161
    %163 = vmatmul.f32.gmra.mxu0 %v96
    %v164 = vpop.f32.mrf.mxu0
    %v165 = vadd.f32 0.0, %v164
    %166 = vdwg.mxu0
    %167 = vmatpush.msra.mxu0 0.0
    %168 = vmatpush.msra.mxu0 0.0
    %169 = vmatpush.msra.mxu0 0.0
    %170 = vmatpush.msra.mxu0 0.0
    %171 = vmatpush.msra.mxu0 0.0
    %172 = vmatpush.msra.mxu0 0.0
    %173 = vmatpush.msra.mxu0 0.0
    %174 = vmatpush.msra.mxu0 0.0
    %175 = vmatpush.msra.mxu0 %v90
    %176 = vmatpush.msra.mxu0 %v86
    %177 = vmatpush.msra.mxu0 %v82
    %178 = vmatpush.msra.mxu0 %v78
    %179 = vmatpush.msra.mxu0 %v74
    %180 = vmatpush.msra.mxu0 %v70
    %181 = vmatpush.msra.mxu0 %v66
    %182 = vmatpush.msra.mxu0 %v62
    %183 = vmatmul.f32.gmra.mxu0 %v93
    %v184 = vpop.f32.mrf.mxu0
    %v185 = vadd.f32 0.0, %v184
    %186 = vmatmul.f32.gmra.mxu0 %v96
    %v187 = vpop.f32.mrf.mxu0
    %v188 = vadd.f32 0.0, %v187
    %189 = vdwg.mxu0
    %v190 = vld [vmem:[%s3] sm:$0xf]
    %v192 = vperm.slane %v190, 0
    %v193 = vperm.slane %v190, 1
    %v194 = vperm.slane %v190, 2
    %v195 = vperm.slane %v190, 3
    %vm200 = vcmask 130048
    %v202 = vsel %vm200, %v57, 0
    %v205 = vsel %vm200, %v58, 0
    %207 = vmatpush.msra.mxu0 0.0
    %208 = vmatpush.msra.mxu0 0.0
    %209 = vmatpush.msra.mxu0 0.0
    %210 = vmatpush.msra.mxu0 0.0
    %211 = vmatpush.msra.mxu0 0.0
    %212 = vmatpush.msra.mxu0 0.0
    %213 = vmatpush.msra.mxu0 0.0
    %214 = vmatpush.msra.mxu0 0.0
    %215 = vmatpush.msra.mxu0 0.0
    %216 = vmatpush.msra.mxu0 0.0
    %217 = vmatpush.msra.mxu0 0.0
    %218 = vmatpush.msra.mxu0 0.0
    %219 = vmatpush.msra.mxu0 0.0
    %220 = vmatpush.msra.mxu0 0.0
    %221 = vmatpush.msra.mxu0 %v119
    %222 = vmatpush.msra.mxu0 %v116
    %223 = vmatmul.f32.gmra.mxu0 %v202
    %v224 = vpop.f32.mrf.mxu0
    %v225 = vadd.f32 %v192, %v224
    %226 = vmatmul.f32.gmra.mxu0 %v205
    %v227 = vpop.f32.mrf.mxu0
    %v228 = vadd.f32 %v192, %v227
    %229 = vdwg.mxu0
    %230 = vmatpush.msra.mxu0 0.0
    %231 = vmatpush.msra.mxu0 0.0
    %232 = vmatpush.msra.mxu0 0.0
    %233 = vmatpush.msra.mxu0 0.0
    %234 = vmatpush.msra.mxu0 0.0
    %235 = vmatpush.msra.mxu0 0.0
    %236 = vmatpush.msra.mxu0 0.0
    %237 = vmatpush.msra.mxu0 0.0
    %238 = vmatpush.msra.mxu0 0.0
    %239 = vmatpush.msra.mxu0 0.0
    %240 = vmatpush.msra.mxu0 0.0
    %241 = vmatpush.msra.mxu0 0.0
    %242 = vmatpush.msra.mxu0 0.0
    %243 = vmatpush.msra.mxu0 0.0
    %244 = vmatpush.msra.mxu0 %v142
    %245 = vmatpush.msra.mxu0 %v139
    %246 = vmatmul.f32.gmra.mxu0 %v202
    %v247 = vpop.f32.mrf.mxu0
    %v248 = vadd.f32 %v193, %v247
    %249 = vmatmul.f32.gmra.mxu0 %v205
    %v250 = vpop.f32.mrf.mxu0
    %v251 = vadd.f32 %v193, %v250
    %252 = vdwg.mxu0
    %253 = vmatpush.msra.mxu0 0.0
    %254 = vmatpush.msra.mxu0 0.0
    %255 = vmatpush.msra.mxu0 0.0
    %256 = vmatpush.msra.mxu0 0.0
    %257 = vmatpush.msra.mxu0 0.0
    %258 = vmatpush.msra.mxu0 0.0
    %259 = vmatpush.msra.mxu0 0.0
    %260 = vmatpush.msra.mxu0 0.0
    %261 = vmatpush.msra.mxu0 0.0
    %262 = vmatpush.msra.mxu0 0.0
    %263 = vmatpush.msra.mxu0 0.0
    %264 = vmatpush.msra.mxu0 0.0
    %265 = vmatpush.msra.mxu0 0.0
    %266 = vmatpush.msra.mxu0 0.0
    %267 = vmatpush.msra.mxu0 %v165
    %268 = vmatpush.msra.mxu0 %v162
    %269 = vmatmul.f32.gmra.mxu0 %v202
    %v270 = vpop.f32.mrf.mxu0
    %v271 = vadd.f32 %v194, %v270
    %272 = vmatmul.f32.gmra.mxu0 %v205
    %v273 = vpop.f32.mrf.mxu0
    %v274 = vadd.f32 %v194, %v273
    %275 = vdwg.mxu0
    %276 = vmatpush.msra.mxu0 0.0
    %277 = vmatpush.msra.mxu0 0.0
    %278 = vmatpush.msra.mxu0 0.0
    %279 = vmatpush.msra.mxu0 0.0
    %280 = vmatpush.msra.mxu0 0.0
    %281 = vmatpush.msra.mxu0 0.0
    %282 = vmatpush.msra.mxu0 0.0
    %283 = vmatpush.msra.mxu0 0.0
    %284 = vmatpush.msra.mxu0 0.0
    %285 = vmatpush.msra.mxu0 0.0
    %286 = vmatpush.msra.mxu0 0.0
    %287 = vmatpush.msra.mxu0 0.0
    %288 = vmatpush.msra.mxu0 0.0
    %289 = vmatpush.msra.mxu0 0.0
    %290 = vmatpush.msra.mxu0 %v188
    %291 = vmatpush.msra.mxu0 %v185
    %292 = vmatmul.f32.gmra.mxu0 %v202
    %v293 = vpop.f32.mrf.mxu0
    %v294 = vadd.f32 %v195, %v293
    %295 = vmatmul.f32.gmra.mxu0 %v205
    %v296 = vpop.f32.mrf.mxu0
    %v297 = vadd.f32 %v195, %v296
    %298 = vdwg.mxu0
    %v299 = vmax.f32 %v225, 0.0
    %v300 = vmax.f32 %v248, 0.0
    %v301 = vmax.f32 %v271, 0.0
    %v302 = vmax.f32 %v294, 0.0
    %v303 = vmax.f32 %v228, 0.0
    %v304 = vmax.f32 %v251, 0.0
    %v305 = vmax.f32 %v274, 0.0
    %v306 = vmax.f32 %v297, 0.0
    %v307 = vld [vmem:[#allocation4] sm:$0xff]
    %v308 = vld [vmem:[#allocation4 + $0x8] sm:$0xff]
    %v309 = vld [vmem:[#allocation4 + $0x10] sm:$0xff]
    %v310 = vld [vmem:[#allocation4 + $0x18] sm:$0xff]
    %v311 = vld [vmem:[#allocation4 + $0x20] sm:$0xff]
    %v312 = vld [vmem:[#allocation4 + $0x28] sm:$0xff]
    %v313 = vld [vmem:[#allocation4 + $0x30] sm:$0xff]
    %v314 = vld [vmem:[#allocation4 + $0x38] sm:$0xff]
    %v315 = vld [vmem:[#allocation4 + $0x40] sm:$0xff]
    %v316 = vld [vmem:[#allocation4 + $0x48] sm:$0xff]
    %v317 = vld [vmem:[#allocation4 + $0x50] sm:$0xff]
    %v318 = vld [vmem:[#allocation4 + $0x58] sm:$0xff]
    %v319 = vld [vmem:[#allocation4 + $0x60] sm:$0xff]
    %v320 = vld [vmem:[#allocation4 + $0x68] sm:$0xff]
    %v321 = vld [vmem:[#allocation4 + $0x70] sm:$0xff]
    %v322 = vld [vmem:[#allocation4 + $0x78] sm:$0xff]
    %v323 = vld [vmem:[#allocation4 + $0x80] sm:$0xff]
    %v324 = vld [vmem:[#allocation4 + $0x88] sm:$0xff]
    %v325 = vld [vmem:[#allocation4 + $0x90] sm:$0xff]
    %v326 = vld [vmem:[#allocation4 + $0x98] sm:$0xff]
    %v327 = vld [vmem:[#allocation4 + $0xa0] sm:$0xff]
    %v328 = vld [vmem:[#allocation4 + $0xa8] sm:$0xff]
    %v329 = vld [vmem:[#allocation4 + $0xb0] sm:$0xff]
    %v330 = vld [vmem:[#allocation4 + $0xb8] sm:$0xff]
    %v331 = vld [vmem:[#allocation4 + $0xc0] sm:$0xff]
    %v332 = vld [vmem:[#allocation4 + $0xc8] sm:$0xff]
    %v333 = vld [vmem:[#allocation4 + $0xd0] sm:$0xff]
    %v334 = vld [vmem:[#allocation4 + $0xd8] sm:$0xff]
    %v335 = vld [vmem:[#allocation4 + $0xe0] sm:$0xff]
    %v336 = vld [vmem:[#allocation4 + $0xe8] sm:$0xff]
    %v337 = vld [vmem:[#allocation4 + $0xf0] sm:$0xff]
    %v338 = vld [vmem:[#allocation4 + $0xf8] sm:$0xff]
    %v339 = vld [vmem:[#allocation4 + $0x100] sm:$0xff]
    %v340 = vld [vmem:[#allocation4 + $0x108] sm:$0xff]
    %v341 = vld [vmem:[#allocation4 + $0x110] sm:$0xff]
    %v342 = vld [vmem:[#allocation4 + $0x118] sm:$0xff]
    %v343 = vld [vmem:[#allocation4 + $0x120] sm:$0xff]
    %v344 = vld [vmem:[#allocation4 + $0x128] sm:$0xff]
    %v345 = vld [vmem:[#allocation4 + $0x130] sm:$0xff]
    %v346 = vld [vmem:[#allocation4 + $0x138] sm:$0xff]
    %v347 = vld [vmem:[#allocation4 + $0x140] sm:$0xff]
    %v348 = vld [vmem:[#allocation4 + $0x148] sm:$0xff]
    %v349 = vld [vmem:[#allocation4 + $0x150] sm:$0xff]
    %v350 = vld [vmem:[#allocation4 + $0x158] sm:$0xff]
    %v351 = vld [vmem:[#allocation4 + $0x160] sm:$0xff]
    %v352 = vld [vmem:[#allocation4 + $0x168] sm:$0xff]
    %v353 = vld [vmem:[#allocation4 + $0x170] sm:$0xff]
    %v354 = vld [vmem:[#allocation4 + $0x178] sm:$0xff]
    %v355 = vld [vmem:[#allocation4 + $0x180] sm:$0xff]
    %v356 = vld [vmem:[#allocation4 + $0x188] sm:$0xff]
    %v357 = vld [vmem:[#allocation4 + $0x190] sm:$0xff]
    %v358 = vld [vmem:[#allocation4 + $0x198] sm:$0xff]
    %v359 = vld [vmem:[#allocation4 + $0x1a0] sm:$0xff]
    %v360 = vld [vmem:[#allocation4 + $0x1a8] sm:$0xff]
    %v361 = vld [vmem:[#allocation4 + $0x1b0] sm:$0xff]
    %v362 = vld [vmem:[#allocation4 + $0x1b8] sm:$0xff]
    %v363 = vld [vmem:[#allocation4 + $0x1c0] sm:$0xff]
    %v364 = vld [vmem:[#allocation4 + $0x1c8] sm:$0xff]
    %v365 = vld [vmem:[#allocation4 + $0x1d0] sm:$0xff]
    %v366 = vld [vmem:[#allocation4 + $0x1d8] sm:$0xff]
    %v367 = vld [vmem:[#allocation4 + $0x1e0] sm:$0xff]
    %v368 = vld [vmem:[#allocation4 + $0x1e8] sm:$0xff]
    %v369 = vld [vmem:[#allocation4 + $0x1f0] sm:$0xff]
    %v370 = vld [vmem:[#allocation4 + $0x1f8] sm:$0xff]
    %371 = vmatpush.msra.mxu0 %v322
    %372 = vmatpush.msra.mxu0 %v321
    %373 = vmatpush.msra.mxu0 %v320
    %374 = vmatpush.msra.mxu0 %v319
    %375 = vmatpush.msra.mxu0 %v318
    %376 = vmatpush.msra.mxu0 %v317
    %377 = vmatpush.msra.mxu0 %v316
    %378 = vmatpush.msra.mxu0 %v315
    %379 = vmatpush.msra.mxu0 %v314
    %380 = vmatpush.msra.mxu0 %v313
    %381 = vmatpush.msra.mxu0 %v312
    %382 = vmatpush.msra.mxu0 %v311
    %383 = vmatpush.msra.mxu0 %v310
    %384 = vmatpush.msra.mxu0 %v309
    %385 = vmatpush.msra.mxu0 %v308
    %386 = vmatpush.msra.mxu0 %v307
    %387 = vmatmul.f32.gmra.mxu0 %v299
    %v388 = vpop.f32.mrf.mxu0
    %v389 = vadd.f32 0.0, %v388
    %390 = vmatmul.f32.gmra.mxu0 %v303
    %v391 = vpop.f32.mrf.mxu0
    %v392 = vadd.f32 0.0, %v391
    %393 = vdwg.mxu0
    %394 = vmatpush.msra.mxu0 %v338
    %395 = vmatpush.msra.mxu0 %v337
    %396 = vmatpush.msra.mxu0 %v336
    %397 = vmatpush.msra.mxu0 %v335
    %398 = vmatpush.msra.mxu0 %v334
    %399 = vmatpush.msra.mxu0 %v333
    %400 = vmatpush.msra.mxu0 %v332
    %401 = vmatpush.msra.mxu0 %v331
    %402 = vmatpush.msra.mxu0 %v330
    %403 = vmatpush.msra.mxu0 %v329
    %404 = vmatpush.msra.mxu0 %v328
    %405 = vmatpush.msra.mxu0 %v327
    %406 = vmatpush.msra.mxu0 %v326
    %407 = vmatpush.msra.mxu0 %v325
    %408 = vmatpush.msra.mxu0 %v324
    %409 = vmatpush.msra.mxu0 %v323
    %410 = vmatmul.f32.gmra.mxu0 %v300
    %v411 = vpop.f32.mrf.mxu0
    %v412 = vadd.f32 %v389, %v411
    %413 = vmatmul.f32.gmra.mxu0 %v304
    %v414 = vpop.f32.mrf.mxu0
    %v415 = vadd.f32 %v392, %v414
    %416 = vdwg.mxu0
    %417 = vmatpush.msra.mxu0 %v354
    %418 = vmatpush.msra.mxu0 %v353
    %419 = vmatpush.msra.mxu0 %v352
    %420 = vmatpush.msra.mxu0 %v351
    %421 = vmatpush.msra.mxu0 %v350
    %422 = vmatpush.msra.mxu0 %v349
    %423 = vmatpush.msra.mxu0 %v348
    %424 = vmatpush.msra.mxu0 %v347
    %425 = vmatpush.msra.mxu0 %v346
    %426 = vmatpush.msra.mxu0 %v345
    %427 = vmatpush.msra.mxu0 %v344
    %428 = vmatpush.msra.mxu0 %v343
    %429 = vmatpush.msra.mxu0 %v342
    %430 = vmatpush.msra.mxu0 %v341
    %431 = vmatpush.msra.mxu0 %v340
    %432 = vmatpush.msra.mxu0 %v339
    %433 = vmatmul.f32.gmra.mxu0 %v301
    %v434 = vpop.f32.mrf.mxu0
    %v435 = vadd.f32 %v412, %v434
    %436 = vmatmul.f32.gmra.mxu0 %v305
    %v437 = vpop.f32.mrf.mxu0
    %v438 = vadd.f32 %v415, %v437
    %439 = vdwg.mxu0
    %440 = vmatpush.msra.mxu0 %v370
    %441 = vmatpush.msra.mxu0 %v369
    %442 = vmatpush.msra.mxu0 %v368
    %443 = vmatpush.msra.mxu0 %v367
    %444 = vmatpush.msra.mxu0 %v366
    %445 = vmatpush.msra.mxu0 %v365
    %446 = vmatpush.msra.mxu0 %v364
    %447 = vmatpush.msra.mxu0 %v363
    %448 = vmatpush.msra.mxu0 %v362
    %449 = vmatpush.msra.mxu0 %v361
    %450 = vmatpush.msra.mxu0 %v360
    %451 = vmatpush.msra.mxu0 %v359
    %452 = vmatpush.msra.mxu0 %v358
    %453 = vmatpush.msra.mxu0 %v357
    %454 = vmatpush.msra.mxu0 %v356
    %455 = vmatpush.msra.mxu0 %v355
    %456 = vmatmul.f32.gmra.mxu0 %v302
    %v457 = vpop.f32.mrf.mxu0
    %v458 = vadd.f32 %v435, %v457
    %459 = vmatmul.f32.gmra.mxu0 %v306
    %v460 = vpop.f32.mrf.mxu0
    %v461 = vadd.f32 %v438, %v460
    %462 = vdwg.mxu0
    %v463 = vld [vmem:[%s5] sm:$0x1]
    %v465 = vperm.slane %v463, 0
    %467 = vmatpush.msra.mxu0 0.0
    %468 = vmatpush.msra.mxu0 0.0
    %469 = vmatpush.msra.mxu0 0.0
    %470 = vmatpush.msra.mxu0 0.0
    %471 = vmatpush.msra.mxu0 0.0
    %472 = vmatpush.msra.mxu0 0.0
    %473 = vmatpush.msra.mxu0 0.0
    %474 = vmatpush.msra.mxu0 0.0
    %475 = vmatpush.msra.mxu0 0.0
    %476 = vmatpush.msra.mxu0 0.0
    %477 = vmatpush.msra.mxu0 0.0
    %478 = vmatpush.msra.mxu0 0.0
    %479 = vmatpush.msra.mxu0 0.0
    %480 = vmatpush.msra.mxu0 0.0
    %481 = vmatpush.msra.mxu0 %v461
    %482 = vmatpush.msra.mxu0 %v458
    %483 = vmatmul.f32.gmra.mxu0 %v202
    %v484 = vpop.f32.mrf.mxu0
    %v485 = vadd.f32 %v465, %v484
    %486 = vmatmul.f32.gmra.mxu0 %v205
    %v487 = vpop.f32.mrf.mxu0
    %v488 = vadd.f32 %v465, %v487
    %489 = vdwg.mxu0
    %490 = vst [vmem:[%s6] sm:$0xff] %v485
    %491 = vst [vmem:[%s6 + $0x8] sm:$0xff] %v488
    // Predicated region
    $region34: #{_gcn_forward_nchw.1} parent=1 // pred_check
      _
    $region35: #{_gcn_forward_nchw.1} parent=1 // pred_check_branch
      %493 = sbr.rel (0) target = $region37
    $region36: #{_gcn_forward_nchw.1} parent=1 // pred_region
      _
    $region37: #{_gcn_forward_nchw.1} parent=1 // pred_fallthru
      _
    // Predicated region
    $region38: #{_gcn_forward_nchw.1} parent=1 // pred_check
      _
    $region39: #{_gcn_forward_nchw.1} parent=1 // pred_check_branch
      %495 = sbr.rel (0) target = $region41
    $region40: #{_gcn_forward_nchw.1} parent=1 // pred_region
      _
    $region41: #{_gcn_forward_nchw.1} parent=1 // pred_fallthru
      _
    %496 = vsyncpa [#allocation3], 1
    %497 = vsyncpa [#allocation5], 1

</llo_original>
